<compile_context>
chip_gen: v5e
topology: v5e:2x2
jax: 0.10.0
libtpu: 0.0.40
codegen_flags: <defaults>
</compile_context>

<pallas_src>
import jax
import jax.numpy as jnp
from jax.experimental import pallas as pl
from jax.experimental.pallas import tpu as pltpu


def _round_up(x, m):
    return ((x + m - 1) // m) * m


def attention_over_latent_kernel(hidden_ref, latent_ref, w1_ref, w2_ref,
                                 bias_ref, out_ref):
    H = hidden_ref.shape[-1]
    L = latent_ref.shape[-1]

    hidden = hidden_ref[...]
    latent = latent_ref[...]

    # attn_fc(concat([hidden, latent])) using the stacked weight slab:
    # rows [0:H) of w1_ref act on hidden, rows [H:H+L) act on latent.
    logits = (
        jnp.dot(hidden, w1_ref[:H, :], preferred_element_type=jnp.float32)
        + jnp.dot(latent, w1_ref[H:H + L, :], preferred_element_type=jnp.float32)
        + bias_ref[0:1, :L].astype(jnp.float32)
    )

    # softmax over the latent axis (dim=1), numerically stable.
    m = jnp.max(logits, axis=-1, keepdims=True)
    e = jnp.exp(logits - m)
    denom = jnp.sum(e, axis=-1, keepdims=True)
    attn = e * pl.reciprocal(denom, approx=True)     # EUP vrcp slot

    # context = attn_weights * latent ; out = context_fc(context)
    context = attn * latent.astype(jnp.float32)
    out = (
        jnp.dot(context, w2_ref[...].astype(jnp.float32),
                preferred_element_type=jnp.float32)
        + bias_ref[1:2, :H].astype(jnp.float32)
    )
    out_ref[...] = out.astype(out_ref.dtype)


def prepare_params(params):
    """One-time weight preprocessing, hoisted out of the per-call hot path."""
    w1 = jnp.asarray(params["attn_fc_w"])        # (L, H + L)  torch Linear layout
    b1 = jnp.asarray(params["attn_fc_b"])        # (L,)
    w2 = jnp.asarray(params["context_fc_w"])     # (H, L)
    b2 = jnp.asarray(params["context_fc_b"])     # (H,)

    L = w1.shape[0]
    H = w2.shape[0]
    assert w1.shape[1] == H + L

    w1_t = jnp.transpose(w1)                     # (H + L, L): rows = [hidden | latent]
    w2_t = jnp.transpose(w2)                     # (L, H)

    W = max(L, H)
    bias = jnp.zeros((2, W), dtype=jnp.float32)
    bias = bias.at[0, :L].set(b1.astype(jnp.float32))
    bias = bias.at[1, :H].set(b2.astype(jnp.float32))

    return {"w1_t": w1_t, "w2_t": w2_t, "bias": bias,
            "latent_dim": L, "hidden_dim": H}


def attention_over_latent(hidden_state, latent, prepped, *, block_batch=512):
    """hidden_state: (B, H), latent: (B, L). Returns (B, H)."""
    B, H = hidden_state.shape
    _, L = latent.shape
    assert H == prepped["hidden_dim"] and L == prepped["latent_dim"]

    # Batch tile: multiple of 8 (f32 sublanes); pad B up if it doesn't divide.
    TB = min(block_batch, _round_up(B, 8))
    Bp = _round_up(B, TB)
    if Bp != B:
        pad = Bp - B
        hidden_state = jnp.pad(hidden_state, ((0, pad), (0, 0)))
        latent = jnp.pad(latent, ((0, pad), (0, 0)))

    itemsize = jnp.dtype(hidden_state.dtype).itemsize
    cost = pl.CostEstimate(
        flops=int(2 * Bp * (H + L) * L + 2 * Bp * L * H + 6 * Bp * L),
        transcendentals=int(Bp * L + Bp),
        bytes_accessed=int(itemsize * (Bp * (H + L) + Bp * H)
                           + 4 * ((H + L) * L + L * H + 2 * max(L, H))),
    )

    out = pl.pallas_call(
        attention_over_latent_kernel,
        out_shape=jax.ShapeDtypeStruct((Bp, H), hidden_state.dtype),
        grid=(Bp // TB,),
        in_specs=[
            pl.BlockSpec((TB, H), lambda i: (i, 0)),                 # streamed
            pl.BlockSpec((TB, L), lambda i: (i, 0)),                 # streamed
            pl.BlockSpec(prepped["w1_t"].shape, lambda i: (0, 0)),   # VMEM-resident
            pl.BlockSpec(prepped["w2_t"].shape, lambda i: (0, 0)),   # VMEM-resident
            pl.BlockSpec(prepped["bias"].shape, lambda i: (0, 0)),   # VMEM-resident
        ],
        out_specs=pl.BlockSpec((TB, H), lambda i: (i, 0)),
        compiler_params=pltpu.CompilerParams(
            dimension_semantics=("parallel",)),
        cost_estimate=cost,
    )(hidden_state, latent, prepped["w1_t"], prepped["w2_t"], prepped["bias"])

    return out if Bp == B else out[:B]


def _reference(hidden_state, latent, params):
    combined = jnp.concatenate([hidden_state, latent], axis=1)
    logits = combined @ params["attn_fc_w"].T + params["attn_fc_b"]
    attn = jax.nn.softmax(logits, axis=1)
    context = attn * latent
    return context @ params["context_fc_w"].T + params["context_fc_b"]


if __name__ == "__main__":
    latent_dim = 16
    hidden_dim = 32
    batch = 256          # small, but large enough to exercise a 2-step pipeline

    key = jax.random.PRNGKey(0)
    k_h, k_l, k_w1, k_b1, k_w2, k_b2 = jax.random.split(key, 6)

    hidden_state = jax.random.normal(k_h, (batch, hidden_dim), dtype=jnp.float32)
    latent = jax.random.normal(k_l, (batch, latent_dim), dtype=jnp.float32)

    fan1 = latent_dim + hidden_dim
    fan2 = latent_dim
    params = {
        "attn_fc_w": jax.random.uniform(
            k_w1, (latent_dim, latent_dim + hidden_dim),
            minval=-1.0 / fan1 ** 0.5, maxval=1.0 / fan1 ** 0.5, dtype=jnp.float32),
        "attn_fc_b": jax.random.uniform(
            k_b1, (latent_dim,),
            minval=-1.0 / fan1 ** 0.5, maxval=1.0 / fan1 ** 0.5, dtype=jnp.float32),
        "context_fc_w": jax.random.uniform(
            k_w2, (hidden_dim, latent_dim),
            minval=-1.0 / fan2 ** 0.5, maxval=1.0 / fan2 ** 0.5, dtype=jnp.float32),
        "context_fc_b": jax.random.uniform(
            k_b2, (hidden_dim,),
            minval=-1.0 / fan2 ** 0.5, maxval=1.0 / fan2 ** 0.5, dtype=jnp.float32),
    }

    # One-time parameter preprocessing (hoisted out of the hot path).
    prepped = prepare_params(params)

    out = attention_over_latent(hidden_state, latent, prepped, block_batch=128)
    out = jax.block_until_ready(out)

    ref = _reference(hidden_state, latent, params)
    assert out.shape == (batch, hidden_dim)
    # approx=True reciprocal loosens tolerance slightly vs exact softmax.
    assert jnp.allclose(out, ref, atol=2e-3, rtol=2e-3), "mismatch vs reference"

    print("KERNEL_OK")
</pallas_src>

<mosaic_0001>
module attributes {stable_mosaic.version = 11 : i64} {
  func.func @attention_over_latent_kernel(%arg0: i32, %arg1: memref<128x32xf32, #tpu.memory_space<vmem>>, %arg2: memref<128x16xf32, #tpu.memory_space<vmem>>, %arg3: memref<48x16xf32, #tpu.memory_space<vmem>>, %arg4: memref<16x32xf32, #tpu.memory_space<vmem>>, %arg5: memref<2x32xf32, #tpu.memory_space<vmem>>, %arg6: memref<128x32xf32, #tpu.memory_space<vmem>>) attributes {dimension_semantics = [#tpu.dimension_semantics<parallel>], iteration_bounds = array<i64: 2>, scalar_prefetch = 0 : i64, scratch_operands = 0 : i64, tpu.core_type = #tpu.core_type<tc>, window_params = [{transform_indices = @transform_0, window_bounds = array<i64: 128, 32>}, {transform_indices = @transform_1, window_bounds = array<i64: 128, 16>}, {pipeline_mode = #tpu.pipeline_mode<synchronous>, transform_indices = @transform_2, window_bounds = array<i64: 48, 16>}, {pipeline_mode = #tpu.pipeline_mode<synchronous>, transform_indices = @transform_3, window_bounds = array<i64: 16, 32>}, {pipeline_mode = #tpu.pipeline_mode<synchronous>, transform_indices = @transform_4, window_bounds = array<i64: 2, 32>}, {transform_indices = @transform_5, window_bounds = array<i64: 128, 32>}]} {
    %c0 = arith.constant 0 : index
    %c0_0 = arith.constant 0 : index
    %0 = vector.load %arg1[%c0, %c0_0] : memref<128x32xf32, #tpu.memory_space<vmem>>, vector<128x32xf32>
    %c0_1 = arith.constant 0 : index
    %c0_2 = arith.constant 0 : index
    %1 = vector.load %arg2[%c0_1, %c0_2] : memref<128x16xf32, #tpu.memory_space<vmem>>, vector<128x16xf32>
    %c0_3 = arith.constant 0 : index
    %c0_4 = arith.constant 0 : index
    %2 = vector.load %arg3[%c0_3, %c0_4] : memref<48x16xf32, #tpu.memory_space<vmem>>, vector<32x16xf32>
    %cst = arith.constant dense<0.000000e+00> : vector<128x16xf32>
    %3 = tpu.matmul %0, %2, %cst {dimension_numbers = #tpu.dot_dimension_numbers<[1], [0], [0], [1], [0, 0, 1, 1], [], []>} : vector<128x32xf32>, vector<32x16xf32>, vector<128x16xf32> -> vector<128x16xf32>
    %c32 = arith.constant 32 : index
    %c0_5 = arith.constant 0 : index
    %4 = vector.load %arg3[%c32, %c0_5] : memref<48x16xf32, #tpu.memory_space<vmem>>, vector<16x16xf32>
    %cst_6 = arith.constant dense<0.000000e+00> : vector<128x16xf32>
    %5 = tpu.matmul %1, %4, %cst_6 {dimension_numbers = #tpu.dot_dimension_numbers<[1], [0], [0], [1], [0, 0, 1, 1], [], []>} : vector<128x16xf32>, vector<16x16xf32>, vector<128x16xf32> -> vector<128x16xf32>
    %6 = arith.addf %3, %5 : vector<128x16xf32>
    %c0_7 = arith.constant 0 : index
    %c0_8 = arith.constant 0 : index
    %7 = vector.load %arg5[%c0_7, %c0_8] : memref<2x32xf32, #tpu.memory_space<vmem>>, vector<1x16xf32>
    %8 = vector.broadcast %7 : vector<1x16xf32> to vector<128x16xf32>
    %9 = arith.addf %6, %8 : vector<128x16xf32>
    %cst_9 = arith.constant dense<0xFF800000> : vector<128xf32>
    %10 = vector.multi_reduction <maximumf>, %9, %cst_9 [1] : vector<128x16xf32> to vector<128xf32>
    %11 = vector.shape_cast %10 : vector<128xf32> to vector<128x1xf32>
    %12 = vector.broadcast %11 : vector<128x1xf32> to vector<128x16xf32>
    %13 = arith.subf %9, %12 : vector<128x16xf32>
    %14 = math.exp %13 : vector<128x16xf32>
    %cst_10 = arith.constant dense<0.000000e+00> : vector<128xf32>
    %15 = vector.multi_reduction <add>, %14, %cst_10 [1] : vector<128x16xf32> to vector<128xf32>
    %16 = vector.shape_cast %15 : vector<128xf32> to vector<128x1xf32>
    %17 = tpu.reciprocal %16 {approx = true} : vector<128x1xf32> -> vector<128x1xf32>
    %18 = vector.broadcast %17 : vector<128x1xf32> to vector<128x16xf32>
    %19 = arith.mulf %14, %18 : vector<128x16xf32>
    %20 = arith.mulf %19, %1 : vector<128x16xf32>
    %c0_11 = arith.constant 0 : index
    %c0_12 = arith.constant 0 : index
    %21 = vector.load %arg4[%c0_11, %c0_12] : memref<16x32xf32, #tpu.memory_space<vmem>>, vector<16x32xf32>
    %cst_13 = arith.constant dense<0.000000e+00> : vector<128x32xf32>
    %22 = tpu.matmul %20, %21, %cst_13 {dimension_numbers = #tpu.dot_dimension_numbers<[1], [0], [0], [1], [0, 0, 1, 1], [], []>} : vector<128x16xf32>, vector<16x32xf32>, vector<128x32xf32> -> vector<128x32xf32>
    %c1 = arith.constant 1 : index
    %c0_14 = arith.constant 0 : index
    %23 = vector.load %arg5[%c1, %c0_14] : memref<2x32xf32, #tpu.memory_space<vmem>>, vector<1x32xf32>
    %24 = vector.broadcast %23 : vector<1x32xf32> to vector<128x32xf32>
    %25 = arith.addf %22, %24 : vector<128x32xf32>
    %c0_15 = arith.constant 0 : index
    %c0_16 = arith.constant 0 : index
    %26 = vector.load %arg6[%c0_15, %c0_16] : memref<128x32xf32, #tpu.memory_space<vmem>>, vector<128x32xf32>
    tpu.vector_store %arg6[%c0_15, %c0_16], %25 {strides = array<i32>} : memref<128x32xf32, #tpu.memory_space<vmem>>, vector<128x32xf32>,
    return
  }
  func.func @transform_0(%arg0: i32) -> (i32, i32) {
    %c0_i32 = arith.constant 0 : i32
    %c0_i32_0 = arith.constant 0 : i32
    return %arg0, %c0_i32 : i32, i32
  }
  func.func @transform_1(%arg0: i32) -> (i32, i32) {
    %c0_i32 = arith.constant 0 : i32
    %c0_i32_0 = arith.constant 0 : i32
    return %arg0, %c0_i32 : i32, i32
  }
  func.func @transform_2(%arg0: i32) -> (i32, i32) {
    %c0_i32 = arith.constant 0 : i32
    %c0_i32_0 = arith.constant 0 : i32
    %c0_i32_1 = arith.constant 0 : i32
    return %c0_i32, %c0_i32_0 : i32, i32
  }
  func.func @transform_3(%arg0: i32) -> (i32, i32) {
    %c0_i32 = arith.constant 0 : i32
    %c0_i32_0 = arith.constant 0 : i32
    %c0_i32_1 = arith.constant 0 : i32
    return %c0_i32, %c0_i32_0 : i32, i32
  }
  func.func @transform_4(%arg0: i32) -> (i32, i32) {
    %c0_i32 = arith.constant 0 : i32
    %c0_i32_0 = arith.constant 0 : i32
    %c0_i32_1 = arith.constant 0 : i32
    return %c0_i32, %c0_i32_0 : i32, i32
  }
  func.func @transform_5(%arg0: i32) -> (i32, i32) {
    %c0_i32 = arith.constant 0 : i32
    %c0_i32_0 = arith.constant 0 : i32
    return %arg0, %c0_i32 : i32, i32
  }
}

</mosaic_0001>

<llo_original>
// kernel: tpu_custom_call.1
$region0: #{tpu_custom_call.1}
  #allocation0 [shape = 'u32[]', space=smem, size = 0x4, offset = 0x4, fixed_abs, tag = 'smem constant byte address 0x4 - core index']
  #allocation1 [shape = 'u32[72,128]{1,0:T(1,128)}', space=vmem, size = 0x9000, scoped, tag = 'internal scratch']
  %s0 = inlined_call_operand.vmem [shape: f32[256,32], index: 0, kind: input, shape index: {}]
  %s1 = inlined_call_operand.vmem [shape: f32[256,16], index: 1, kind: input, shape index: {}]
  %s2 = inlined_call_operand.vmem [shape: f32[48,16], index: 2, kind: input, shape index: {}]
  %s3 = inlined_call_operand.vmem [shape: f32[16,32], index: 3, kind: input, shape index: {}]
  %s4 = inlined_call_operand.vmem [shape: f32[2,32], index: 4, kind: input, shape index: {}]
  %s5 = inlined_call_operand.vmem [shape: f32[256,32], index: 5, kind: output, shape index: {}]
  %s6 = sld [smem:[#allocation0]]
  $region53: #{tpu_custom_call.1} parent=0
    _
  %s8 = ssub.s32 1, %s6
  %s9 = scalar_select 0, %s8, %s6
  loop: start=0, step=1, limit=4
  $region2: #{tpu_custom_call.1} parent=0 // loop_pre_header
    _
  $region3: #{tpu_custom_call.1} parent=0 // loop_header
    %s11 = sphi 0, %s15
    %p12 = scmp.ge.s32.totalorder %s11, 4
    %s21 = sphi 0, %s23
    %s24 = sphi 0, %s21
    %s25 = sphi 0, %s24
    %s41 = sphi 0, %s25
    %s47 = sphi 0, %s49
    %s50 = sphi 0, %s47
    %s51 = sphi 0, %s50
    %s67 = sphi 0, %s51
    %s71 = sphi 0, %s71
    %s73 = sphi 0, %s71
    %s74 = sphi 0, %s73
    %s88 = sphi 0, %s74
    %s92 = sphi 0, %s92
    %s94 = sphi 0, %s92
    %s95 = sphi 0, %s94
    %s109 = sphi 0, %s95
    %s113 = sphi 0, %s113
    %s115 = sphi 0, %s113
    %s116 = sphi 0, %s115
    %s130 = sphi 0, %s116
    %s136 = sphi 0, %s138
    %s139 = sphi 0, %s136
    %s140 = sphi 0, %s139
    %s156 = sphi 0, %s140
  $region4: #{tpu_custom_call.1} parent=0 // loop_header_branch
    %14 = sbr.rel (%p12) target = $region8
  $region5: #{tpu_custom_call.1} parent=0 // loop_body
    %s16 = ssub.s32 %s11, 1
    %s17 = ssub.s32 %s11, 2
    %s18 = sadd.s32 %s11, 1
    %s19 = ssub.s32 %s11, %s18
    %p20 = scmp.eq.s32.totalorder %s19, 0
    %s22 = sadd.s32 %s21, 1
    %s23 = scalar_select %p20, %s21, %s22
    %p26 = pneg %p20
    %p27 = scmp.eq.s32.totalorder %s11, 1
    %p28 = por %p26, %p27
    %p29 = scmp.ne.s32.totalorder %s21, %s24
    %p30 = scmp.eq.s32.totalorder %s11, 0
    %p31 = por %p29, %p30
    %p32 = scmp.ne.s32.totalorder %s21, %s24
    %p33 = scmp.eq.s32.totalorder %s16, 1
    %p34 = por %p32, %p33
    %p35 = scmp.ne.s32.totalorder %s24, %s25
    %p36 = scmp.eq.s32.totalorder %s16, 0
    %p37 = por %p35, %p36
    %p38 = scmp.ne.s32.totalorder %s24, %s25
    %p39 = scmp.eq.s32.totalorder %s17, 1
    %p40 = por %p38, %p39
    %p42 = scmp.ne.s32.totalorder %s25, %s41
    %p43 = scmp.eq.s32.totalorder %s17, 0
    %p44 = por %p42, %p43
    %s45 = ssub.s32 %s11, %s18
    %p46 = scmp.eq.s32.totalorder %s45, 0
    %s48 = sadd.s32 %s47, 1
    %s49 = scalar_select %p46, %s47, %s48
    %p52 = pneg %p46
    %p53 = scmp.eq.s32.totalorder %s11, 1
    %p54 = por %p52, %p53
    %p55 = scmp.ne.s32.totalorder %s47, %s50
    %p56 = scmp.eq.s32.totalorder %s11, 0
    %p57 = por %p55, %p56
    %p58 = scmp.ne.s32.totalorder %s47, %s50
    %p59 = scmp.eq.s32.totalorder %s16, 1
    %p60 = por %p58, %p59
    %p61 = scmp.ne.s32.totalorder %s50, %s51
    %p62 = scmp.eq.s32.totalorder %s16, 0
    %p63 = por %p61, %p62
    %p64 = scmp.ne.s32.totalorder %s50, %s51
    %p65 = scmp.eq.s32.totalorder %s17, 1
    %p66 = por %p64, %p65
    %p68 = scmp.ne.s32.totalorder %s51, %s67
    %p69 = scmp.eq.s32.totalorder %s17, 0
    %p70 = por %p68, %p69
    %s72 = sadd.s32 %s71, 1
    %p75 = scmp.eq.s32.totalorder %s11, 1
    %p76 = scmp.ne.s32.totalorder %s71, %s73
    %p77 = scmp.eq.s32.totalorder %s11, 0
    %p78 = por %p76, %p77
    %p79 = scmp.ne.s32.totalorder %s71, %s73
    %p80 = scmp.eq.s32.totalorder %s16, 1
    %p81 = por %p79, %p80
    %p82 = scmp.ne.s32.totalorder %s73, %s74
    %p83 = scmp.eq.s32.totalorder %s16, 0
    %p84 = por %p82, %p83
    %p85 = scmp.ne.s32.totalorder %s73, %s74
    %p86 = scmp.eq.s32.totalorder %s17, 1
    %p87 = por %p85, %p86
    %p89 = scmp.ne.s32.totalorder %s74, %s88
    %p90 = scmp.eq.s32.totalorder %s17, 0
    %p91 = por %p89, %p90
    %s93 = sadd.s32 %s92, 1
    %p96 = scmp.eq.s32.totalorder %s11, 1
    %p97 = scmp.ne.s32.totalorder %s92, %s94
    %p98 = scmp.eq.s32.totalorder %s11, 0
    %p99 = por %p97, %p98
    %p100 = scmp.ne.s32.totalorder %s92, %s94
    %p101 = scmp.eq.s32.totalorder %s16, 1
    %p102 = por %p100, %p101
    %p103 = scmp.ne.s32.totalorder %s94, %s95
    %p104 = scmp.eq.s32.totalorder %s16, 0
    %p105 = por %p103, %p104
    %p106 = scmp.ne.s32.totalorder %s94, %s95
    %p107 = scmp.eq.s32.totalorder %s17, 1
    %p108 = por %p106, %p107
    %p110 = scmp.ne.s32.totalorder %s95, %s109
    %p111 = scmp.eq.s32.totalorder %s17, 0
    %p112 = por %p110, %p111
    %s114 = sadd.s32 %s113, 1
    %p117 = scmp.eq.s32.totalorder %s11, 1
    %p118 = scmp.ne.s32.totalorder %s113, %s115
    %p119 = scmp.eq.s32.totalorder %s11, 0
    %p120 = por %p118, %p119
    %p121 = scmp.ne.s32.totalorder %s113, %s115
    %p122 = scmp.eq.s32.totalorder %s16, 1
    %p123 = por %p121, %p122
    %p124 = scmp.ne.s32.totalorder %s115, %s116
    %p125 = scmp.eq.s32.totalorder %s16, 0
    %p126 = por %p124, %p125
    %p127 = scmp.ne.s32.totalorder %s115, %s116
    %p128 = scmp.eq.s32.totalorder %s17, 1
    %p129 = por %p127, %p128
    %p131 = scmp.ne.s32.totalorder %s116, %s130
    %p132 = scmp.eq.s32.totalorder %s17, 0
    %p133 = por %p131, %p132
    %s134 = ssub.s32 %s11, %s18
    %p135 = scmp.eq.s32.totalorder %s134, 0
    %s137 = sadd.s32 %s136, 1
    %s138 = scalar_select %p135, %s136, %s137
    %p141 = pneg %p135
    %p142 = scmp.eq.s32.totalorder %s11, 1
    %p143 = por %p141, %p142
    %p144 = scmp.ne.s32.totalorder %s136, %s139
    %p145 = scmp.eq.s32.totalorder %s11, 0
    %p146 = por %p144, %p145
    %p147 = scmp.ne.s32.totalorder %s136, %s139
    %p148 = scmp.eq.s32.totalorder %s16, 1
    %p149 = por %p147, %p148
    %p150 = scmp.ne.s32.totalorder %s139, %s140
    %p151 = scmp.eq.s32.totalorder %s16, 0
    %p152 = por %p150, %p151
    %p153 = scmp.ne.s32.totalorder %s139, %s140
    %p154 = scmp.eq.s32.totalorder %s17, 1
    %p155 = por %p153, %p154
    %p157 = scmp.ne.s32.totalorder %s140, %s156
    %p158 = scmp.eq.s32.totalorder %s17, 0
    %p159 = por %p157, %p158
    %p160 = scmp.le.s32.totalorder 1, %s11
    %p161 = scmp.lt.s32.totalorder %s11, 3
    %p162 = pnand %p160, %p161
    %p163 = pneg %p162
    // Predicated region
    $region9: #{tpu_custom_call.1} parent=5 // pred_check
      _
    $region10: #{tpu_custom_call.1} parent=5 // pred_check_branch
      %165 = sbr.rel (%p162) target = $region12
    $region11: #{tpu_custom_call.1} parent=5 // pred_region
      %s166 = ssub.s32 %s11, 1
      // Predicated region
      $region13: #{tpu_custom_call.1} parent=11 // pred_check
        %p167 = pneg %p84
      $region14: #{tpu_custom_call.1} parent=11 // pred_check_branch
        %169 = sbr.rel (%p167) target = $region16
      $region15: #{tpu_custom_call.1} parent=11 // pred_region
        _
      $region16: #{tpu_custom_call.1} parent=11 // pred_fallthru
        _
      // Predicated region
      $region17: #{tpu_custom_call.1} parent=11 // pred_check
        %p170 = pneg %p105
      $region18: #{tpu_custom_call.1} parent=11 // pred_check_branch
        %172 = sbr.rel (%p170) target = $region20
      $region19: #{tpu_custom_call.1} parent=11 // pred_region
        _
      $region20: #{tpu_custom_call.1} parent=11 // pred_fallthru
        _
      // Predicated region
      $region21: #{tpu_custom_call.1} parent=11 // pred_check
        %p173 = pneg %p126
      $region22: #{tpu_custom_call.1} parent=11 // pred_check_branch
        %175 = sbr.rel (%p173) target = $region24
      $region23: #{tpu_custom_call.1} parent=11 // pred_region
        _
      $region24: #{tpu_custom_call.1} parent=11 // pred_fallthru
        _
    $region12: #{tpu_custom_call.1} parent=5 // pred_fallthru
      _
    %p176 = scmp.lt.s32.totalorder %s11, 2
    // Predicated region
    $region25: #{tpu_custom_call.1} parent=5 // pred_check
      %p177 = pneg %p176
    $region26: #{tpu_custom_call.1} parent=5 // pred_check_branch
      %179 = sbr.rel (%p177) target = $region28
    $region27: #{tpu_custom_call.1} parent=5 // pred_region
      // Predicated region
      $region29: #{tpu_custom_call.1} parent=27 // pred_check
        %p180 = pneg %p31
      $region30: #{tpu_custom_call.1} parent=27 // pred_check_branch
        %182 = sbr.rel (%p180) target = $region32
      $region31: #{tpu_custom_call.1} parent=27 // pred_region
        %s183 = smul.u32 16, %s11
        %p184 = scmp.lt.s32.totalorder %s183, 31
        %s185 = scalar_select %p184, %s183, 31
        %s186 = smul.addr %s185, 8
        %s187 = scalar_lea.vmem %s0, %s186
        %s188 = smul.u32 16, %s11
      $region32: #{tpu_custom_call.1} parent=27 // pred_fallthru
        _
      // Predicated region
      $region33: #{tpu_custom_call.1} parent=27 // pred_check
        %p189 = pneg %p57
      $region34: #{tpu_custom_call.1} parent=27 // pred_check_branch
        %191 = sbr.rel (%p189) target = $region36
      $region35: #{tpu_custom_call.1} parent=27 // pred_region
        %s192 = smul.u32 16, %s11
        %p193 = scmp.lt.s32.totalorder %s192, 31
        %s194 = scalar_select %p193, %s192, 31
        %s195 = smul.addr %s194, 8
        %s196 = scalar_lea.vmem %s1, %s195
        %s197 = smul.u32 16, %s11
      $region36: #{tpu_custom_call.1} parent=27 // pred_fallthru
        _
    $region28: #{tpu_custom_call.1} parent=5 // pred_fallthru
      _
    %p198 = scmp.le.s32.totalorder 1, %s11
    %p199 = scmp.lt.s32.totalorder %s11, 3
    %p200 = pnand %p198, %p199
    %p201 = pneg %p200
    // Predicated region
    $region37: #{tpu_custom_call.1} parent=5 // pred_check
      _
    $region38: #{tpu_custom_call.1} parent=5 // pred_check_branch
      %203 = sbr.rel (%p200) target = $region40
    $region39: #{tpu_custom_call.1} parent=5 // pred_region
      %s204 = ssub.s32 %s11, 1
      %s205 = smul.u32 16, %s16
      %p206 = scmp.lt.s32.totalorder %s205, 31
      %s207 = scalar_select %p206, %s205, 31
      %s208 = smul.addr %s207, 8
      %s209 = scalar_lea.vmem %s0, %s208
      %p210 = pneg %p37
      %p211 = pneg %p34
      %s212 = smul.u32 16, %s16
      %p213 = scmp.lt.s32.totalorder %s212, 31
      %s214 = scalar_select %p213, %s212, 31
      %s215 = smul.addr %s214, 8
      %s216 = scalar_lea.vmem %s1, %s215
      %p217 = pneg %p63
      %p218 = pneg %p60
      %p219 = pneg %p84
      %p220 = pneg %p81
      %p221 = pneg %p105
      %p222 = pneg %p102
      %p223 = pneg %p126
      %p224 = pneg %p123
      %p225 = pneg %p152
      %p226 = pneg %p149
      %s227 = smul.u32 16, %s16
      %p228 = scmp.lt.s32.totalorder %s227, 31
      %s229 = scalar_select %p228, %s227, 31
      %s230 = smul.addr %s229, 8
      %s231 = scalar_lea.vmem %s5, %s230
      %s232 = smul.u32 16, %s16
      %p233 = scmp.lt.s32.totalorder %s232, 31
      %s234 = scalar_select %p233, %s232, 31
      %s235 = smul.addr %s234, 8
      %s236 = scalar_lea.vmem %s0, %s235
      %s237 = smul.u32 16, %s16
      %s238 = smul.u32 16, %s16
      %p239 = scmp.lt.s32.totalorder %s238, 31
      %s240 = scalar_select %p239, %s238, 31
      %s241 = smul.addr %s240, 8
      %s242 = scalar_lea.vmem %s1, %s241
      %s243 = smul.u32 16, %s16
      %s244 = smul.u32 16, %s16
      %p245 = scmp.lt.s32.totalorder %s244, 31
      %s246 = scalar_select %p245, %s244, 31
      %s247 = smul.addr %s246, 8
      %s248 = scalar_lea.vmem %s5, %s247
      %s249 = smul.u32 16, %s16
      %v250 = vld [vmem:[%s236] sm:$0xff]
      %v251 = vld [vmem:[%s236 + $0x8] sm:$0xff]
      %v252 = vld [vmem:[%s236 + $0x10] sm:$0xff]
      %v253 = vld [vmem:[%s236 + $0x18] sm:$0xff]
      %v254 = vld [vmem:[%s236 + $0x20] sm:$0xff]
      %v255 = vld [vmem:[%s236 + $0x28] sm:$0xff]
      %v256 = vld [vmem:[%s236 + $0x30] sm:$0xff]
      %v257 = vld [vmem:[%s236 + $0x38] sm:$0xff]
      %v258 = vld [vmem:[%s236 + $0x40] sm:$0xff]
      %v259 = vld [vmem:[%s236 + $0x48] sm:$0xff]
      %v260 = vld [vmem:[%s236 + $0x50] sm:$0xff]
      %v261 = vld [vmem:[%s236 + $0x58] sm:$0xff]
      %v262 = vld [vmem:[%s236 + $0x60] sm:$0xff]
      %v263 = vld [vmem:[%s236 + $0x68] sm:$0xff]
      %v264 = vld [vmem:[%s236 + $0x70] sm:$0xff]
      %v265 = vld [vmem:[%s236 + $0x78] sm:$0xff]
      %v266 = vld [vmem:[%s242] sm:$0xff]
      %v267 = vld [vmem:[%s242 + $0x8] sm:$0xff]
      %v268 = vld [vmem:[%s242 + $0x10] sm:$0xff]
      %v269 = vld [vmem:[%s242 + $0x18] sm:$0xff]
      %v270 = vld [vmem:[%s242 + $0x20] sm:$0xff]
      %v271 = vld [vmem:[%s242 + $0x28] sm:$0xff]
      %v272 = vld [vmem:[%s242 + $0x30] sm:$0xff]
      %v273 = vld [vmem:[%s242 + $0x38] sm:$0xff]
      %v274 = vld [vmem:[%s242 + $0x40] sm:$0xff]
      %v275 = vld [vmem:[%s242 + $0x48] sm:$0xff]
      %v276 = vld [vmem:[%s242 + $0x50] sm:$0xff]
      %v277 = vld [vmem:[%s242 + $0x58] sm:$0xff]
      %v278 = vld [vmem:[%s242 + $0x60] sm:$0xff]
      %v279 = vld [vmem:[%s242 + $0x68] sm:$0xff]
      %v280 = vld [vmem:[%s242 + $0x70] sm:$0xff]
      %v281 = vld [vmem:[%s242 + $0x78] sm:$0xff]
      %v282 = vld [vmem:[%s2] sm:$0xff]
      %v283 = vld [vmem:[%s2 + $0x8] sm:$0xff]
      %v284 = vld [vmem:[%s2 + $0x10] sm:$0xff]
      %v285 = vld [vmem:[%s2 + $0x18] sm:$0xff]
      %v286 = vld [vmem:[%s2 + $0x20] sm:$0xff]
      %v287 = vld [vmem:[%s2 + $0x28] sm:$0xff]
      %vm288 = vcmask 130048
      %v290 = vsel %vm288, %v266, 0
      %v293 = vsel %vm288, %v267, 0
      %v296 = vsel %vm288, %v268, 0
      %v299 = vsel %vm288, %v269, 0
      %v302 = vsel %vm288, %v270, 0
      %v305 = vsel %vm288, %v271, 0
      %v308 = vsel %vm288, %v272, 0
      %v311 = vsel %vm288, %v273, 0
      %v314 = vsel %vm288, %v274, 0
      %v317 = vsel %vm288, %v275, 0
      %v320 = vsel %vm288, %v276, 0
      %v323 = vsel %vm288, %v277, 0
      %v326 = vsel %vm288, %v278, 0
      %v329 = vsel %vm288, %v279, 0
      %v332 = vsel %vm288, %v280, 0
      %v335 = vsel %vm288, %v281, 0
      %337 = vmatpush.msra.mxu0 0.0
      %338 = vmatpush.msra.mxu0 0.0
      %339 = vmatpush.msra.mxu0 0.0
      %340 = vmatpush.msra.mxu0 0.0
      %341 = vmatpush.msra.mxu0 0.0
      %342 = vmatpush.msra.mxu0 0.0
      %343 = vmatpush.msra.mxu0 0.0
      %344 = vmatpush.msra.mxu0 0.0
      %345 = vmatpush.msra.mxu0 0.0
      %346 = vmatpush.msra.mxu0 0.0
      %347 = vmatpush.msra.mxu0 0.0
      %348 = vmatpush.msra.mxu0 0.0
      %349 = vmatpush.msra.mxu0 0.0
      %350 = vmatpush.msra.mxu0 0.0
      %351 = vmatpush.msra.mxu0 %v287
      %352 = vmatpush.msra.mxu0 %v286
      %353 = vmatmul.f32.gmra.mxu0 %v290
      %v354 = vpop.f32.mrf.mxu0
      %v355 = vadd.f32 0.0, %v354
      %356 = vmatmul.f32.gmra.mxu0 %v293
      %v357 = vpop.f32.mrf.mxu0
      %v358 = vadd.f32 0.0, %v357
      %359 = vmatmul.f32.gmra.mxu0 %v296
      %v360 = vpop.f32.mrf.mxu0
      %v361 = vadd.f32 0.0, %v360
      %362 = vmatmul.f32.gmra.mxu0 %v299
      %v363 = vpop.f32.mrf.mxu0
      %v364 = vadd.f32 0.0, %v363
      %365 = vmatmul.f32.gmra.mxu0 %v302
      %v366 = vpop.f32.mrf.mxu0
      %v367 = vadd.f32 0.0, %v366
      %368 = vmatmul.f32.gmra.mxu0 %v305
      %v369 = vpop.f32.mrf.mxu0
      %v370 = vadd.f32 0.0, %v369
      %371 = vmatmul.f32.gmra.mxu0 %v308
      %v372 = vpop.f32.mrf.mxu0
      %v373 = vadd.f32 0.0, %v372
      %374 = vmatmul.f32.gmra.mxu0 %v311
      %v375 = vpop.f32.mrf.mxu0
      %v376 = vadd.f32 0.0, %v375
      %377 = vmatmul.f32.gmra.mxu0 %v314
      %v378 = vpop.f32.mrf.mxu0
      %v379 = vadd.f32 0.0, %v378
      %380 = vmatmul.f32.gmra.mxu0 %v317
      %v381 = vpop.f32.mrf.mxu0
      %v382 = vadd.f32 0.0, %v381
      %383 = vmatmul.f32.gmra.mxu0 %v320
      %v384 = vpop.f32.mrf.mxu0
      %v385 = vadd.f32 0.0, %v384
      %386 = vmatmul.f32.gmra.mxu0 %v323
      %v387 = vpop.f32.mrf.mxu0
      %v388 = vadd.f32 0.0, %v387
      %389 = vmatmul.f32.gmra.mxu0 %v326
      %v390 = vpop.f32.mrf.mxu0
      %v391 = vadd.f32 0.0, %v390
      %392 = vmatmul.f32.gmra.mxu0 %v329
      %v393 = vpop.f32.mrf.mxu0
      %v394 = vadd.f32 0.0, %v393
      %395 = vmatmul.f32.gmra.mxu0 %v332
      %v396 = vpop.f32.mrf.mxu0
      %v397 = vadd.f32 0.0, %v396
      %398 = vmatmul.f32.gmra.mxu0 %v335
      %v399 = vpop.f32.mrf.mxu0
      %v400 = vadd.f32 0.0, %v399
      %401 = vdwg.mxu0
      %vm402 = vcmask 261120
      %v404 = vsel %vm402, %v250, 0
      %v407 = vsel %vm402, %v251, 0
      %v410 = vsel %vm402, %v252, 0
      %v413 = vsel %vm402, %v253, 0
      %v416 = vsel %vm402, %v254, 0
      %v419 = vsel %vm402, %v255, 0
      %v422 = vsel %vm402, %v256, 0
      %v425 = vsel %vm402, %v257, 0
      %v428 = vsel %vm402, %v258, 0
      %v431 = vsel %vm402, %v259, 0
      %v434 = vsel %vm402, %v260, 0
      %v437 = vsel %vm402, %v261, 0
      %v440 = vsel %vm402, %v262, 0
      %v443 = vsel %vm402, %v263, 0
      %v446 = vsel %vm402, %v264, 0
      %v449 = vsel %vm402, %v265, 0
      %451 = vmatpush.msra.mxu0 0.0
      %452 = vmatpush.msra.mxu0 0.0
      %453 = vmatpush.msra.mxu0 0.0
      %454 = vmatpush.msra.mxu0 0.0
      %455 = vmatpush.msra.mxu0 0.0
      %456 = vmatpush.msra.mxu0 0.0
      %457 = vmatpush.msra.mxu0 0.0
      %458 = vmatpush.msra.mxu0 0.0
      %459 = vmatpush.msra.mxu0 0.0
      %460 = vmatpush.msra.mxu0 0.0
      %461 = vmatpush.msra.mxu0 0.0
      %462 = vmatpush.msra.mxu0 0.0
      %463 = vmatpush.msra.mxu0 %v285
      %464 = vmatpush.msra.mxu0 %v284
      %465 = vmatpush.msra.mxu0 %v283
      %466 = vmatpush.msra.mxu0 %v282
      %467 = vmatmul.f32.gmra.mxu0 %v404
      %v468 = vpop.f32.mrf.mxu0
      %v469 = vadd.f32 %v355, %v468
      %470 = vmatmul.f32.gmra.mxu0 %v407
      %v471 = vpop.f32.mrf.mxu0
      %v472 = vadd.f32 %v358, %v471
      %473 = vmatmul.f32.gmra.mxu0 %v410
      %v474 = vpop.f32.mrf.mxu0
      %v475 = vadd.f32 %v361, %v474
      %476 = vmatmul.f32.gmra.mxu0 %v413
      %v477 = vpop.f32.mrf.mxu0
      %v478 = vadd.f32 %v364, %v477
      %479 = vmatmul.f32.gmra.mxu0 %v416
      %v480 = vpop.f32.mrf.mxu0
      %v481 = vadd.f32 %v367, %v480
      %482 = vmatmul.f32.gmra.mxu0 %v419
      %v483 = vpop.f32.mrf.mxu0
      %v484 = vadd.f32 %v370, %v483
      %485 = vmatmul.f32.gmra.mxu0 %v422
      %v486 = vpop.f32.mrf.mxu0
      %v487 = vadd.f32 %v373, %v486
      %488 = vmatmul.f32.gmra.mxu0 %v425
      %v489 = vpop.f32.mrf.mxu0
      %v490 = vadd.f32 %v376, %v489
      %491 = vmatmul.f32.gmra.mxu0 %v428
      %v492 = vpop.f32.mrf.mxu0
      %v493 = vadd.f32 %v379, %v492
      %494 = vmatmul.f32.gmra.mxu0 %v431
      %v495 = vpop.f32.mrf.mxu0
      %v496 = vadd.f32 %v382, %v495
      %497 = vmatmul.f32.gmra.mxu0 %v434
      %v498 = vpop.f32.mrf.mxu0
      %v499 = vadd.f32 %v385, %v498
      %500 = vmatmul.f32.gmra.mxu0 %v437
      %v501 = vpop.f32.mrf.mxu0
      %v502 = vadd.f32 %v388, %v501
      %503 = vmatmul.f32.gmra.mxu0 %v440
      %v504 = vpop.f32.mrf.mxu0
      %v505 = vadd.f32 %v391, %v504
      %506 = vmatmul.f32.gmra.mxu0 %v443
      %v507 = vpop.f32.mrf.mxu0
      %v508 = vadd.f32 %v394, %v507
      %509 = vmatmul.f32.gmra.mxu0 %v446
      %v510 = vpop.f32.mrf.mxu0
      %v511 = vadd.f32 %v397, %v510
      %512 = vmatmul.f32.gmra.mxu0 %v449
      %v513 = vpop.f32.mrf.mxu0
      %v514 = vadd.f32 %v400, %v513
      %515 = vdwg.mxu0
      %v516 = vld [vmem:[%s4] sm:$0x1]
      %v517 = vperm.slane %v516, 0
      %v518 = vadd.f32 %v469, %v517
      %v519 = vadd.f32 %v472, %v517
      %v520 = vadd.f32 %v475, %v517
      %v521 = vadd.f32 %v478, %v517
      %v522 = vadd.f32 %v481, %v517
      %v523 = vadd.f32 %v484, %v517
      %v524 = vadd.f32 %v487, %v517
      %v525 = vadd.f32 %v490, %v517
      %v526 = vadd.f32 %v493, %v517
      %v527 = vadd.f32 %v496, %v517
      %v528 = vadd.f32 %v499, %v517
      %v529 = vadd.f32 %v502, %v517
      %v530 = vadd.f32 %v505, %v517
      %v531 = vadd.f32 %v508, %v517
      %v532 = vadd.f32 %v511, %v517
      %v533 = vadd.f32 %v514, %v517
      %v534 = vsel %vm288, %v518, -inf
      %535 = vmax.xlane.f32.xlu0 %v534
      %v536 = vpop.xlane.xlu0 %535
      %v537 = vsel %vm288, %v519, -inf
      %538 = vmax.xlane.f32.xlu0 %v537
      %v539 = vpop.xlane.xlu0 %538
      %v540 = vsel %vm288, %v520, -inf
      %541 = vmax.xlane.f32.xlu0 %v540
      %v542 = vpop.xlane.xlu0 %541
      %v543 = vsel %vm288, %v521, -inf
      %544 = vmax.xlane.f32.xlu0 %v543
      %v545 = vpop.xlane.xlu0 %544
      %v546 = vsel %vm288, %v522, -inf
      %547 = vmax.xlane.f32.xlu0 %v546
      %v548 = vpop.xlane.xlu0 %547
      %v549 = vsel %vm288, %v523, -inf
      %550 = vmax.xlane.f32.xlu0 %v549
      %v551 = vpop.xlane.xlu0 %550
      %v552 = vsel %vm288, %v524, -inf
      %553 = vmax.xlane.f32.xlu0 %v552
      %v554 = vpop.xlane.xlu0 %553
      %v555 = vsel %vm288, %v525, -inf
      %556 = vmax.xlane.f32.xlu0 %v555
      %v557 = vpop.xlane.xlu0 %556
      %v558 = vsel %vm288, %v526, -inf
      %559 = vmax.xlane.f32.xlu0 %v558
      %v560 = vpop.xlane.xlu0 %559
      %v561 = vsel %vm288, %v527, -inf
      %562 = vmax.xlane.f32.xlu0 %v561
      %v563 = vpop.xlane.xlu0 %562
      %v564 = vsel %vm288, %v528, -inf
      %565 = vmax.xlane.f32.xlu0 %v564
      %v566 = vpop.xlane.xlu0 %565
      %v567 = vsel %vm288, %v529, -inf
      %568 = vmax.xlane.f32.xlu0 %v567
      %v569 = vpop.xlane.xlu0 %568
      %v570 = vsel %vm288, %v530, -inf
      %571 = vmax.xlane.f32.xlu0 %v570
      %v572 = vpop.xlane.xlu0 %571
      %v573 = vsel %vm288, %v531, -inf
      %574 = vmax.xlane.f32.xlu0 %v573
      %v575 = vpop.xlane.xlu0 %574
      %v576 = vsel %vm288, %v532, -inf
      %577 = vmax.xlane.f32.xlu0 %v576
      %v578 = vpop.xlane.xlu0 %577
      %v579 = vsel %vm288, %v533, -inf
      %580 = vmax.xlane.f32.xlu0 %v579
      %v581 = vpop.xlane.xlu0 %580
      %v582 = vsub.f32 %v518, %v536
      %v583 = vsub.f32 %v519, %v539
      %v584 = vsub.f32 %v520, %v542
      %v585 = vsub.f32 %v521, %v545
      %v586 = vsub.f32 %v522, %v548
      %v587 = vsub.f32 %v523, %v551
      %v588 = vsub.f32 %v524, %v554
      %v589 = vsub.f32 %v525, %v557
      %v590 = vsub.f32 %v526, %v560
      %v591 = vsub.f32 %v527, %v563
      %v592 = vsub.f32 %v528, %v566
      %v593 = vsub.f32 %v529, %v569
      %v594 = vsub.f32 %v530, %v572
      %v595 = vsub.f32 %v531, %v575
      %v596 = vsub.f32 %v532, %v578
      %v597 = vsub.f32 %v533, %v581
      %v598 = vmul.f32 %v582, 1.442695
      %v599 = vpow.pop %v598
      %v600 = vmul.f32 %v583, 1.442695
      %v601 = vpow.pop %v600
      %v602 = vmul.f32 %v584, 1.442695
      %v603 = vpow.pop %v602
      %v604 = vmul.f32 %v585, 1.442695
      %v605 = vpow.pop %v604
      %v606 = vmul.f32 %v586, 1.442695
      %v607 = vpow.pop %v606
      %v608 = vmul.f32 %v587, 1.442695
      %v609 = vpow.pop %v608
      %v610 = vmul.f32 %v588, 1.442695
      %v611 = vpow.pop %v610
      %v612 = vmul.f32 %v589, 1.442695
      %v613 = vpow.pop %v612
      %v614 = vmul.f32 %v590, 1.442695
      %v615 = vpow.pop %v614
      %v616 = vmul.f32 %v591, 1.442695
      %v617 = vpow.pop %v616
      %v618 = vmul.f32 %v592, 1.442695
      %v619 = vpow.pop %v618
      %v620 = vmul.f32 %v593, 1.442695
      %v621 = vpow.pop %v620
      %v622 = vmul.f32 %v594, 1.442695
      %v623 = vpow.pop %v622
      %v624 = vmul.f32 %v595, 1.442695
      %v625 = vpow.pop %v624
      %v626 = vmul.f32 %v596, 1.442695
      %v627 = vpow.pop %v626
      %v628 = vmul.f32 %v597, 1.442695
      %v629 = vpow.pop %v628
      %v630 = vsel %vm288, %v599, 0.0
      %631 = vadd.xlane.f32.xlu0 %v630
      %v632 = vpop.xlane.xlu0 %631
      %v633 = vsel %vm288, %v601, 0.0
      %634 = vadd.xlane.f32.xlu0 %v633
      %v635 = vpop.xlane.xlu0 %634
      %v636 = vsel %vm288, %v603, 0.0
      %637 = vadd.xlane.f32.xlu0 %v636
      %v638 = vpop.xlane.xlu0 %637
      %v639 = vsel %vm288, %v605, 0.0
      %640 = vadd.xlane.f32.xlu0 %v639
      %v641 = vpop.xlane.xlu0 %640
      %v642 = vsel %vm288, %v607, 0.0
      %643 = vadd.xlane.f32.xlu0 %v642
      %v644 = vpop.xlane.xlu0 %643
      %v645 = vsel %vm288, %v609, 0.0
      %646 = vadd.xlane.f32.xlu0 %v645
      %v647 = vpop.xlane.xlu0 %646
      %v648 = vsel %vm288, %v611, 0.0
      %649 = vadd.xlane.f32.xlu0 %v648
      %v650 = vpop.xlane.xlu0 %649
      %v651 = vsel %vm288, %v613, 0.0
      %652 = vadd.xlane.f32.xlu0 %v651
      %v653 = vpop.xlane.xlu0 %652
      %v654 = vsel %vm288, %v615, 0.0
      %655 = vadd.xlane.f32.xlu0 %v654
      %v656 = vpop.xlane.xlu0 %655
      %v657 = vsel %vm288, %v617, 0.0
      %658 = vadd.xlane.f32.xlu0 %v657
      %v659 = vpop.xlane.xlu0 %658
      %v660 = vsel %vm288, %v619, 0.0
      %661 = vadd.xlane.f32.xlu0 %v660
      %v662 = vpop.xlane.xlu0 %661
      %v663 = vsel %vm288, %v621, 0.0
      %664 = vadd.xlane.f32.xlu0 %v663
      %v665 = vpop.xlane.xlu0 %664
      %v666 = vsel %vm288, %v623, 0.0
      %667 = vadd.xlane.f32.xlu0 %v666
      %v668 = vpop.xlane.xlu0 %667
      %v669 = vsel %vm288, %v625, 0.0
      %670 = vadd.xlane.f32.xlu0 %v669
      %v671 = vpop.xlane.xlu0 %670
      %v672 = vsel %vm288, %v627, 0.0
      %673 = vadd.xlane.f32.xlu0 %v672
      %v674 = vpop.xlane.xlu0 %673
      %v675 = vsel %vm288, %v629, 0.0
      %676 = vadd.xlane.f32.xlu0 %v675
      %v677 = vpop.xlane.xlu0 %676
      %v678 = vrcp.pop %v632
      %v679 = vrcp.pop %v635
      %v680 = vrcp.pop %v638
      %v681 = vrcp.pop %v641
      %v682 = vrcp.pop %v644
      %v683 = vrcp.pop %v647
      %v684 = vrcp.pop %v650
      %v685 = vrcp.pop %v653
      %v686 = vrcp.pop %v656
      %v687 = vrcp.pop %v659
      %v688 = vrcp.pop %v662
      %v689 = vrcp.pop %v665
      %v690 = vrcp.pop %v668
      %v691 = vrcp.pop %v671
      %v692 = vrcp.pop %v674
      %v693 = vrcp.pop %v677
      %v694 = vmul.f32 %v599, %v678
      %v695 = vmul.f32 %v601, %v679
      %v696 = vmul.f32 %v603, %v680
      %v697 = vmul.f32 %v605, %v681
      %v698 = vmul.f32 %v607, %v682
      %v699 = vmul.f32 %v609, %v683
      %v700 = vmul.f32 %v611, %v684
      %v701 = vmul.f32 %v613, %v685
      %v702 = vmul.f32 %v615, %v686
      %v703 = vmul.f32 %v617, %v687
      %v704 = vmul.f32 %v619, %v688
      %v705 = vmul.f32 %v621, %v689
      %v706 = vmul.f32 %v623, %v690
      %v707 = vmul.f32 %v625, %v691
      %v708 = vmul.f32 %v627, %v692
      %v709 = vmul.f32 %v629, %v693
      %v710 = vmul.f32 %v694, %v266
      %v711 = vmul.f32 %v695, %v267
      %v712 = vmul.f32 %v696, %v268
      %v713 = vmul.f32 %v697, %v269
      %v714 = vmul.f32 %v698, %v270
      %v715 = vmul.f32 %v699, %v271
      %v716 = vmul.f32 %v700, %v272
      %v717 = vmul.f32 %v701, %v273
      %v718 = vmul.f32 %v702, %v274
      %v719 = vmul.f32 %v703, %v275
      %v720 = vmul.f32 %v704, %v276
      %v721 = vmul.f32 %v705, %v277
      %v722 = vmul.f32 %v706, %v278
      %v723 = vmul.f32 %v707, %v279
      %v724 = vmul.f32 %v708, %v280
      %v725 = vmul.f32 %v709, %v281
      %v726 = vld [vmem:[%s3] sm:$0xff]
      %v727 = vld [vmem:[%s3 + $0x8] sm:$0xff]
      %v728 = vld [vmem:[%s4 + $0x1] sm:$0x1]
      %v729 = vperm.slane %v728, 0
      %v731 = vsel %vm288, %v710, 0
      %v734 = vsel %vm288, %v711, 0
      %v737 = vsel %vm288, %v712, 0
      %v740 = vsel %vm288, %v713, 0
      %v743 = vsel %vm288, %v714, 0
      %v746 = vsel %vm288, %v715, 0
      %v749 = vsel %vm288, %v716, 0
      %v752 = vsel %vm288, %v717, 0
      %v755 = vsel %vm288, %v718, 0
      %v758 = vsel %vm288, %v719, 0
      %v761 = vsel %vm288, %v720, 0
      %v764 = vsel %vm288, %v721, 0
      %v767 = vsel %vm288, %v722, 0
      %v770 = vsel %vm288, %v723, 0
      %v773 = vsel %vm288, %v724, 0
      %v776 = vsel %vm288, %v725, 0
      %778 = vmatpush.msra.mxu0 0.0
      %779 = vmatpush.msra.mxu0 0.0
      %780 = vmatpush.msra.mxu0 0.0
      %781 = vmatpush.msra.mxu0 0.0
      %782 = vmatpush.msra.mxu0 0.0
      %783 = vmatpush.msra.mxu0 0.0
      %784 = vmatpush.msra.mxu0 0.0
      %785 = vmatpush.msra.mxu0 0.0
      %786 = vmatpush.msra.mxu0 0.0
      %787 = vmatpush.msra.mxu0 0.0
      %788 = vmatpush.msra.mxu0 0.0
      %789 = vmatpush.msra.mxu0 0.0
      %790 = vmatpush.msra.mxu0 0.0
      %791 = vmatpush.msra.mxu0 0.0
      %792 = vmatpush.msra.mxu0 %v727
      %793 = vmatpush.msra.mxu0 %v726
      %794 = vmatmul.f32.gmra.mxu0 %v731
      %v795 = vpop.f32.mrf.mxu0
      %v796 = vadd.f32 %v729, %v795
      %797 = vmatmul.f32.gmra.mxu0 %v734
      %v798 = vpop.f32.mrf.mxu0
      %v799 = vadd.f32 %v729, %v798
      %800 = vmatmul.f32.gmra.mxu0 %v737
      %v801 = vpop.f32.mrf.mxu0
      %v802 = vadd.f32 %v729, %v801
      %803 = vmatmul.f32.gmra.mxu0 %v740
      %v804 = vpop.f32.mrf.mxu0
      %v805 = vadd.f32 %v729, %v804
      %806 = vmatmul.f32.gmra.mxu0 %v743
      %v807 = vpop.f32.mrf.mxu0
      %v808 = vadd.f32 %v729, %v807
      %809 = vmatmul.f32.gmra.mxu0 %v746
      %v810 = vpop.f32.mrf.mxu0
      %v811 = vadd.f32 %v729, %v810
      %812 = vmatmul.f32.gmra.mxu0 %v749
      %v813 = vpop.f32.mrf.mxu0
      %v814 = vadd.f32 %v729, %v813
      %815 = vmatmul.f32.gmra.mxu0 %v752
      %v816 = vpop.f32.mrf.mxu0
      %v817 = vadd.f32 %v729, %v816
      %818 = vmatmul.f32.gmra.mxu0 %v755
      %v819 = vpop.f32.mrf.mxu0
      %v820 = vadd.f32 %v729, %v819
      %821 = vmatmul.f32.gmra.mxu0 %v758
      %v822 = vpop.f32.mrf.mxu0
      %v823 = vadd.f32 %v729, %v822
      %824 = vmatmul.f32.gmra.mxu0 %v761
      %v825 = vpop.f32.mrf.mxu0
      %v826 = vadd.f32 %v729, %v825
      %827 = vmatmul.f32.gmra.mxu0 %v764
      %v828 = vpop.f32.mrf.mxu0
      %v829 = vadd.f32 %v729, %v828
      %830 = vmatmul.f32.gmra.mxu0 %v767
      %v831 = vpop.f32.mrf.mxu0
      %v832 = vadd.f32 %v729, %v831
      %833 = vmatmul.f32.gmra.mxu0 %v770
      %v834 = vpop.f32.mrf.mxu0
      %v835 = vadd.f32 %v729, %v834
      %836 = vmatmul.f32.gmra.mxu0 %v773
      %v837 = vpop.f32.mrf.mxu0
      %v838 = vadd.f32 %v729, %v837
      %839 = vmatmul.f32.gmra.mxu0 %v776
      %v840 = vpop.f32.mrf.mxu0
      %v841 = vadd.f32 %v729, %v840
      %842 = vdwg.mxu0
      %843 = vst.msk [vmem:[%s248] sm:$0xff] %vm402, %v796
      %844 = vst.msk [vmem:[%s248 + $0x8] sm:$0xff] %vm402, %v799
      %845 = vst.msk [vmem:[%s248 + $0x10] sm:$0xff] %vm402, %v802
      %846 = vst.msk [vmem:[%s248 + $0x18] sm:$0xff] %vm402, %v805
      %847 = vst.msk [vmem:[%s248 + $0x20] sm:$0xff] %vm402, %v808
      %848 = vst.msk [vmem:[%s248 + $0x28] sm:$0xff] %vm402, %v811
      %849 = vst.msk [vmem:[%s248 + $0x30] sm:$0xff] %vm402, %v814
      %850 = vst.msk [vmem:[%s248 + $0x38] sm:$0xff] %vm402, %v817
      %851 = vst.msk [vmem:[%s248 + $0x40] sm:$0xff] %vm402, %v820
      %852 = vst.msk [vmem:[%s248 + $0x48] sm:$0xff] %vm402, %v823
      %853 = vst.msk [vmem:[%s248 + $0x50] sm:$0xff] %vm402, %v826
      %854 = vst.msk [vmem:[%s248 + $0x58] sm:$0xff] %vm402, %v829
      %855 = vst.msk [vmem:[%s248 + $0x60] sm:$0xff] %vm402, %v832
      %856 = vst.msk [vmem:[%s248 + $0x68] sm:$0xff] %vm402, %v835
      %857 = vst.msk [vmem:[%s248 + $0x70] sm:$0xff] %vm402, %v838
      %858 = vst.msk [vmem:[%s248 + $0x78] sm:$0xff] %vm402, %v841
      %s859 = smul.u32 16, %s16
      %p860 = scmp.lt.s32.totalorder %s859, 31
      %s861 = scalar_select %p860, %s859, 31
      %s862 = smul.addr %s861, 8
      %s863 = scalar_lea.vmem %s5, %s862
      // Predicated region
      $region41: #{tpu_custom_call.1} parent=39 // pred_check
        %p864 = pneg %p149
      $region42: #{tpu_custom_call.1} parent=39 // pred_check_branch
        %866 = sbr.rel (%p864) target = $region44
      $region43: #{tpu_custom_call.1} parent=39 // pred_region
        %s867 = smul.u32 16, %s16
      $region44: #{tpu_custom_call.1} parent=39 // pred_fallthru
        _
    $region40: #{tpu_custom_call.1} parent=5 // pred_fallthru
      _
    %p868 = scmp.le.s32.totalorder 2, %s11
    // Predicated region
    $region45: #{tpu_custom_call.1} parent=5 // pred_check
      %p869 = pneg %p868
    $region46: #{tpu_custom_call.1} parent=5 // pred_check_branch
      %871 = sbr.rel (%p869) target = $region48
    $region47: #{tpu_custom_call.1} parent=5 // pred_region
      %s872 = ssub.s32 %s11, 2
      // Predicated region
      $region49: #{tpu_custom_call.1} parent=47 // pred_check
        %p873 = pneg %p155
      $region50: #{tpu_custom_call.1} parent=47 // pred_check_branch
        %875 = sbr.rel (%p873) target = $region52
      $region51: #{tpu_custom_call.1} parent=47 // pred_region
        %s876 = smul.u32 16, %s17
        %p877 = scmp.lt.s32.totalorder %s876, 31
        %s878 = scalar_select %p877, %s876, 31
        %s879 = smul.addr %s878, 8
        %s880 = scalar_lea.vmem %s5, %s879
      $region52: #{tpu_custom_call.1} parent=47 // pred_fallthru
        _
    $region48: #{tpu_custom_call.1} parent=5 // pred_fallthru
      _
  $region6: #{tpu_custom_call.1} parent=0 // loop_footer
    %s15 = sadd.s32 1, %s11
  $region7: #{tpu_custom_call.1} parent=0 // loop_footer_branch
    %10 = sbr.rel target = $region3
  $region8: #{tpu_custom_call.1} parent=0 // loop_exit
    _

</llo_original>
